<compile_context>
chip_gen: v6e
topology: v6e:2x2x1
jax: 0.10.0
libtpu: 0.0.40
codegen_flags: <defaults>
</compile_context>

<pallas_src>
import jax
import jax.numpy as jnp
from jax.experimental import pallas as pl
from jax.experimental.pallas import tpu as pltpu


# ---------------------------------------------------------------------------
# Kernels
# ---------------------------------------------------------------------------
def _linear_resident_kernel(x_ref, w_ref, o_ref):
    # One full-tile MXU matmul per grid step; f32 accumulation inside the MXU;
    # single lane-dense store (friendly to v5e's single vst slot).
    o_ref[...] = jnp.dot(
        x_ref[...], w_ref[...], preferred_element_type=jnp.float32
    ).astype(o_ref.dtype)


def _linear_ktiled_kernel(x_ref, w_ref, o_ref, acc_ref):
    # Reduction over the trailing K grid axis with an f32 VMEM accumulator.
    @pl.when(pl.program_id(2) == 0)
    def _():
        acc_ref[...] = jnp.zeros_like(acc_ref)

    acc_ref[...] += jnp.dot(
        x_ref[...], w_ref[...], preferred_element_type=jnp.float32
    )

    @pl.when(pl.program_id(2) == pl.num_programs(2) - 1)
    def _():
        o_ref[...] = acc_ref[...].astype(o_ref.dtype)


# ---------------------------------------------------------------------------
# Helpers
# ---------------------------------------------------------------------------
def _round_up(x: int, m: int) -> int:
    return ((x + m - 1) // m) * m


# Conservative: fits the scoped-VMEM default on v5e/v6e (16/32 MiB) with
# headroom, and well under v7x's 32 MiB default.
_VMEM_BUDGET_BYTES = 20 * 1024 * 1024


def _sublane_align(dtype) -> int:
    # f32 -> 8, bf16 -> 16, int8/fp8 -> 32 (sub-32-bit dtypes pack sublanes).
    itemsize = jnp.dtype(dtype).itemsize
    return 8 * max(1, 4 // itemsize)


def _pad2d(a: jax.Array, rows: int, cols: int) -> jax.Array:
    r, c = a.shape
    if (rows, cols) == (r, c):
        return a
    return jnp.pad(a, ((0, rows - r), (0, cols - c)))


# ---------------------------------------------------------------------------
# Pallas forward path
# ---------------------------------------------------------------------------
def linear_projector_forward_pallas(
    x: jax.Array,
    w: jax.Array,
    *,
    block_m: int = 512,
    block_n: int = 256,
    block_k: int = 512,
    force_ktiled: bool = False,
) -> jax.Array:
    """Y = X @ W via a Pallas TPU kernel.

    x: (M, in_dim), w: (in_dim, out_dim) -> (M, out_dim).
    K and N are zero-padded to multiples of 128 for lane-dense loads/stores.
    Small W stays VMEM-resident over a 1-D 'parallel' M grid; large W falls
    back to a 3-D (M, N, K) grid with an f32 accumulator.
    """
    M, K = x.shape
    K2, N = w.shape
    assert K == K2, f"in_dim mismatch: {K} vs {K2}"

    out_dtype = x.dtype
    bpe = max(jnp.dtype(x.dtype).itemsize, jnp.dtype(w.dtype).itemsize)
    m_align = _sublane_align(out_dtype)

    # Lane-dense padding of the feature dims (exact: zeros contribute nothing).
    k_pad = _round_up(K, 128)
    n_pad = _round_up(N, 128)

    # --- Path selection: can (2x double-buffered) W + tiles fit in VMEM? ----
    def resident_need(tm: int) -> int:
        # 2x X tile + 2x Y tile + (conservatively) 2x W block.
        return (2 * tm * (k_pad + n_pad) + 2 * k_pad * n_pad) * bpe

    tm = _round_up(min(block_m, _round_up(M, m_align)), m_align)
    while tm > m_align and resident_need(tm) > _VMEM_BUDGET_BYTES:
        tm = _round_up(tm // 2, m_align)

    use_resident = (not force_ktiled) and resident_need(tm) <= _VMEM_BUDGET_BYTES

    if use_resident:
        m_pad = _round_up(max(M, tm), tm)
        x_p = _pad2d(x, m_pad, k_pad)
        w_p = _pad2d(w, k_pad, n_pad)

        y_p = pl.pallas_call(
            _linear_resident_kernel,
            out_shape=jax.ShapeDtypeStruct((m_pad, n_pad), out_dtype),
            grid_spec=pltpu.PrefetchScalarGridSpec(
                num_scalar_prefetch=0,
                grid=(m_pad // tm,),
                in_specs=[
                    pl.BlockSpec((tm, k_pad), lambda i: (i, 0)),
                    # Same block index every step -> W stays VMEM-resident.
                    pl.BlockSpec((k_pad, n_pad), lambda i: (0, 0)),
                ],
                out_specs=pl.BlockSpec((tm, n_pad), lambda i: (i, 0)),
            ),
            compiler_params=pltpu.CompilerParams(
                dimension_semantics=("parallel",)
            ),
        )(x_p, w_p)
        return y_p[:M, :N]

    # --- General k-tiled path (large in_dim / out_dim) ----------------------
    tn = min(_round_up(block_n, 128), n_pad)
    tk = min(_round_up(block_k, 128), k_pad)

    def ktiled_need(tm_: int) -> int:
        # 2x X + 2x W + 2x Y tiles (dtype bpe) + 1x f32 accumulator.
        return (2 * tm_ * tk + 2 * tk * tn + 2 * tm_ * tn) * bpe + tm_ * tn * 4

    tm = _round_up(min(block_m, _round_up(M, m_align)), m_align)
    while tm > m_align and ktiled_need(tm) > _VMEM_BUDGET_BYTES:
        tm = _round_up(tm // 2, m_align)

    m_pad = _round_up(max(M, tm), tm)
    x_p = _pad2d(x, m_pad, k_pad)
    w_p = _pad2d(w, k_pad, n_pad)

    grid = (m_pad // tm, n_pad // tn, k_pad // tk)

    y_p = pl.pallas_call(
        _linear_ktiled_kernel,
        out_shape=jax.ShapeDtypeStruct((m_pad, n_pad), out_dtype),
        grid_spec=pltpu.PrefetchScalarGridSpec(
            num_scalar_prefetch=0,
            grid=grid,
            in_specs=[
                pl.BlockSpec((tm, tk), lambda i, j, k: (i, k)),
                pl.BlockSpec((tk, tn), lambda i, j, k: (k, j)),
            ],
            out_specs=pl.BlockSpec((tm, tn), lambda i, j, k: (i, j)),
            scratch_shapes=[pltpu.VMEM((tm, tn), jnp.float32)],
        ),
        compiler_params=pltpu.CompilerParams(
            dimension_semantics=("parallel", "parallel", "arbitrary")
        ),
    )(x_p, w_p)
    return y_p[:M, :N]


def linear_projector_forward(x: jax.Array, w: jax.Array) -> jax.Array:
    """Dispatcher: tiny problems are pure fixed overhead for a custom call,
    so fall back to plain JAX there; otherwise use the Pallas kernel."""
    M, K = x.shape
    _, N = w.shape
    bytes_moved = (M * (K + N) + K * N) * jnp.dtype(x.dtype).itemsize
    if bytes_moved < (1 << 20):  # < 1 MiB of traffic: let XLA handle it
        return x @ w
    return linear_projector_forward_pallas(x, w)


# ---------------------------------------------------------------------------
# Weight init mirroring the PyTorch module
# ---------------------------------------------------------------------------
def make_linear_projector_weight(in_dim: int, out_dim: int) -> jax.Array:
    # unitarize(eye(in_dim)[:, :out_dim]) -> column-normalized identity slice
    # (a no-op for this init); guard against zero norms.
    w = jnp.eye(in_dim, dtype=jnp.float32)[:, :out_dim]
    norm = jnp.linalg.norm(w, axis=0, keepdims=True)
    w = w / jnp.maximum(norm, 1e-12)
    return w


# ---------------------------------------------------------------------------
# Self-test
# ---------------------------------------------------------------------------
if __name__ == "__main__":
    key = jax.random.PRNGKey(0)

    # --- Toy shape matching the module spec: exercise the resident-W path ---
    batch, in_dim, out_dim = 8, 32, 16
    kx, kw2 = jax.random.split(key)
    x = jax.random.normal(kx, (batch, in_dim), dtype=jnp.float32)
    w = make_linear_projector_weight(in_dim, out_dim)

    y = linear_projector_forward_pallas(x, w)
    jax.block_until_ready(y)
    y_ref = x @ w
    assert y.shape == (batch, out_dim)
    assert jnp.allclose(y, y_ref, atol=1e-5, rtol=1e-5)

    # Dispatcher agrees (routes this toy size to plain JAX).
    y_disp = linear_projector_forward(x, w)
    jax.block_until_ready(y_disp)
    assert jnp.allclose(y_disp, y_ref, atol=1e-5, rtol=1e-5)

    # --- Force the k-tiled accumulator path on a small shape ----------------
    M2, K2_, N2 = 16, 256, 128
    x2 = jax.random.normal(kw2, (M2, K2_), dtype=jnp.float32)
    w2 = jax.random.normal(jax.random.PRNGKey(1), (K2_, N2), dtype=jnp.float32) * 0.05
    y2 = linear_projector_forward_pallas(
        x2, w2, block_m=16, block_n=128, block_k=128, force_ktiled=True
    )
    jax.block_until_ready(y2)
    y2_ref = x2 @ w2
    assert y2.shape == (M2, N2)
    assert jnp.allclose(y2, y2_ref, atol=1e-3, rtol=1e-3)

    print("KERNEL_OK")
</pallas_src>

<mosaic_0001>
module attributes {stable_mosaic.version = 11 : i64} {
  func.func @_linear_resident_kernel(%arg0: i32, %arg1: memref<8x128xf32, #tpu.memory_space<vmem>>, %arg2: memref<128x128xf32, #tpu.memory_space<vmem>>, %arg3: memref<8x128xf32, #tpu.memory_space<vmem>>) attributes {dimension_semantics = [#tpu.dimension_semantics<parallel>], iteration_bounds = array<i64: 1>, scalar_prefetch = 0 : i64, scratch_operands = 0 : i64, tpu.core_type = #tpu.core_type<tc>, window_params = [{transform_indices = @transform_0, window_bounds = array<i64: 8, 128>}, {pipeline_mode = #tpu.pipeline_mode<synchronous>, transform_indices = @transform_1, window_bounds = array<i64: 128, 128>}, {transform_indices = @transform_2, window_bounds = array<i64: 8, 128>}]} {
    %c0 = arith.constant 0 : index
    %c0_0 = arith.constant 0 : index
    %0 = vector.load %arg1[%c0, %c0_0] : memref<8x128xf32, #tpu.memory_space<vmem>>, vector<8x128xf32>
    %c0_1 = arith.constant 0 : index
    %c0_2 = arith.constant 0 : index
    %1 = vector.load %arg2[%c0_1, %c0_2] : memref<128x128xf32, #tpu.memory_space<vmem>>, vector<128x128xf32>
    %cst = arith.constant dense<0.000000e+00> : vector<8x128xf32>
    %2 = tpu.matmul %0, %1, %cst {dimension_numbers = #tpu.dot_dimension_numbers<[1], [0], [0], [1], [0, 0, 1, 1], [], []>} : vector<8x128xf32>, vector<128x128xf32>, vector<8x128xf32> -> vector<8x128xf32>
    %c0_3 = arith.constant 0 : index
    %c0_4 = arith.constant 0 : index
    %3 = vector.load %arg3[%c0_3, %c0_4] : memref<8x128xf32, #tpu.memory_space<vmem>>, vector<8x128xf32>
    tpu.vector_store %arg3[%c0_3, %c0_4], %2 {strides = array<i32>} : memref<8x128xf32, #tpu.memory_space<vmem>>, vector<8x128xf32>,
    return
  }
  func.func @transform_0(%arg0: i32) -> (i32, i32) {
    %c0_i32 = arith.constant 0 : i32
    %c0_i32_0 = arith.constant 0 : i32
    return %arg0, %c0_i32 : i32, i32
  }
  func.func @transform_1(%arg0: i32) -> (i32, i32) {
    %c0_i32 = arith.constant 0 : i32
    %c0_i32_0 = arith.constant 0 : i32
    %c0_i32_1 = arith.constant 0 : i32
    return %c0_i32, %c0_i32_0 : i32, i32
  }
  func.func @transform_2(%arg0: i32) -> (i32, i32) {
    %c0_i32 = arith.constant 0 : i32
    %c0_i32_0 = arith.constant 0 : i32
    return %arg0, %c0_i32 : i32, i32
  }
}

</mosaic_0001>

<llo_original>
// kernel: tpu_custom_call.1
$region0: #{tpu_custom_call.1}
  #allocation0 [shape = 'u32[]', space=smem, size = 0x4, offset = 0x4, fixed_abs, tag = 'smem constant byte address 0x4 - core index']
  #allocation1 [shape = 'u32[144,128]{1,0:T(1,128)}', space=vmem, size = 0x12000, scoped, tag = 'internal scratch']
  %s0 = inlined_call_operand.hbm [shape: f32[8,128], index: 0, kind: input, shape index: {}]
  %s1 = inlined_call_operand.hbm [shape: f32[128,128], index: 1, kind: input, shape index: {}]
  %s2 = inlined_call_operand.hbm [shape: f32[8,128], index: 2, kind: output, shape index: {}]
  %s3 = sld [smem:[#allocation0]]
  $region26: #{tpu_custom_call.1} parent=0
    _
  %s5 = ssub.s32 1, %s3
  %s6 = scalar_select 0, %s5, %s3
  $region1: #{tpu_custom_call.1} parent=0
    #allocation2 [shape = 'u8[4096]{0}', space=vmem, size = 0x1000, scoped, tag = 'input window, operand 0, single buffered']
    #allocation3 [shape = 's32[1]{0}', space=sflag, size = 0x4, scoped, tag = 'scoped memory for tpu_custom_call.1']
    #allocation4 [shape = 's32[1]{0}', space=sflag, size = 0x4, scoped, tag = 'scoped memory for tpu_custom_call.1']
    #allocation5 [shape = 'u8[65536]{0}', space=vmem, size = 0x10000, scoped, tag = 'input window, operand 1, single buffered']
    #allocation6 [shape = 's32[1]{0}', space=sflag, size = 0x4, scoped, tag = 'scoped memory for tpu_custom_call.1']
    #allocation7 [shape = 'u8[4096]{0}', space=vmem, size = 0x1000, scoped, tag = 'output window, operand 0, single buffered']
    %7 = vsyncpa [#allocation3], 0
    %8 = vsyncpa [#allocation6], 0
    %9 = vsyncpa [#allocation4], 0
    // Predicated region
    $region2: #{tpu_custom_call.1} parent=1 // pred_check
      _
    $region3: #{tpu_custom_call.1} parent=1 // pred_check_branch
      %11 = sbr.rel (0) target = $region5
    $region4: #{tpu_custom_call.1} parent=1 // pred_region
      %s13 = ssub.s32 128, 128
      %14 = vsyncadd [#allocation3], %s13
      %s16 = sshll.u32 [#allocation2], 4
      %s17 = int_to_ptr.vmem [resolvable:$true] %s16
      %19 = dma.hbm_to_vmem [thread:$0]  %s0, 128, %s17, [#allocation3]
    $region5: #{tpu_custom_call.1} parent=1 // pred_fallthru
      _
    // Predicated region
    $region6: #{tpu_custom_call.1} parent=1 // pred_check
      _
    $region7: #{tpu_custom_call.1} parent=1 // pred_check_branch
      %21 = sbr.rel (0) target = $region9
    $region8: #{tpu_custom_call.1} parent=1 // pred_region
      %s23 = ssub.s32 2048, 2048
      %24 = vsyncadd [#allocation6], %s23
      %s25 = sshll.u32 [#allocation5], 4
      %s26 = int_to_ptr.vmem [resolvable:$true] %s25
      %31 = dma.hbm_to_vmem [thread:$0]  %s1, 2048, %s26, [#allocation6], 128, 128, 8
    $region9: #{tpu_custom_call.1} parent=1 // pred_fallthru
      _
    // Predicated region
    $region10: #{tpu_custom_call.1} parent=1 // pred_check
      _
    $region11: #{tpu_custom_call.1} parent=1 // pred_check_branch
      %33 = sbr.rel (0) target = $region13
    $region12: #{tpu_custom_call.1} parent=1 // pred_region
      %34 = dma.done [#allocation3], 128
    $region13: #{tpu_custom_call.1} parent=1 // pred_fallthru
      _
    // Predicated region
    $region14: #{tpu_custom_call.1} parent=1 // pred_check
      _
    $region15: #{tpu_custom_call.1} parent=1 // pred_check_branch
      %36 = sbr.rel (0) target = $region17
    $region16: #{tpu_custom_call.1} parent=1 // pred_region
      %37 = dma.done [#allocation6], 2048
    $region17: #{tpu_custom_call.1} parent=1 // pred_fallthru
      _
    %v38 = vld [vmem:[#allocation2] sm:$0xff]
    %v39 = vld [vmem:[#allocation5] sm:$0xff]
    %v40 = vld [vmem:[#allocation5 + $0x8] sm:$0xff]
    %v41 = vld [vmem:[#allocation5 + $0x10] sm:$0xff]
    %v42 = vld [vmem:[#allocation5 + $0x18] sm:$0xff]
    %v43 = vld [vmem:[#allocation5 + $0x20] sm:$0xff]
    %v44 = vld [vmem:[#allocation5 + $0x28] sm:$0xff]
    %v45 = vld [vmem:[#allocation5 + $0x30] sm:$0xff]
    %v46 = vld [vmem:[#allocation5 + $0x38] sm:$0xff]
    %v47 = vld [vmem:[#allocation5 + $0x40] sm:$0xff]
    %v48 = vld [vmem:[#allocation5 + $0x48] sm:$0xff]
    %v49 = vld [vmem:[#allocation5 + $0x50] sm:$0xff]
    %v50 = vld [vmem:[#allocation5 + $0x58] sm:$0xff]
    %v51 = vld [vmem:[#allocation5 + $0x60] sm:$0xff]
    %v52 = vld [vmem:[#allocation5 + $0x68] sm:$0xff]
    %v53 = vld [vmem:[#allocation5 + $0x70] sm:$0xff]
    %v54 = vld [vmem:[#allocation5 + $0x78] sm:$0xff]
    %55 = vmatprep.subr.mxu0 0.0
    %56 = vmatpush1.msra.mxu0 %v54
    %57 = vmatprep.subr.mxu0 0.0
    %58 = vmatpush1.msra.mxu0 %v53
    %59 = vmatprep.subr.mxu0 0.0
    %60 = vmatpush1.msra.mxu0 %v52
    %61 = vmatprep.subr.mxu0 0.0
    %62 = vmatpush1.msra.mxu0 %v51
    %63 = vmatprep.subr.mxu0 0.0
    %64 = vmatpush1.msra.mxu0 %v50
    %65 = vmatprep.subr.mxu0 0.0
    %66 = vmatpush1.msra.mxu0 %v49
    %67 = vmatprep.subr.mxu0 0.0
    %68 = vmatpush1.msra.mxu0 %v48
    %69 = vmatprep.subr.mxu0 0.0
    %70 = vmatpush1.msra.mxu0 %v47
    %71 = vmatprep.subr.mxu0 0.0
    %72 = vmatpush1.msra.mxu0 %v46
    %73 = vmatprep.subr.mxu0 0.0
    %74 = vmatpush1.msra.mxu0 %v45
    %75 = vmatprep.subr.mxu0 0.0
    %76 = vmatpush1.msra.mxu0 %v44
    %77 = vmatprep.subr.mxu0 0.0
    %78 = vmatpush1.msra.mxu0 %v43
    %79 = vmatprep.subr.mxu0 0.0
    %80 = vmatpush1.msra.mxu0 %v42
    %81 = vmatprep.subr.mxu0 0.0
    %82 = vmatpush1.msra.mxu0 %v41
    %83 = vmatprep.subr.mxu0 0.0
    %84 = vmatpush1.msra.mxu0 %v40
    %85 = vmatprep.subr.mxu0 0.0
    %86 = vmatpush1.msra.mxu0 %v39
    %87 = vmatprep.subr.mxu0 0.0
    %88 = vmatpush2.msra.mxu0 0.0
    %89 = vmatprep.subr.mxu0 0.0
    %90 = vmatpush2.msra.mxu0 0.0
    %91 = vmatprep.subr.mxu0 0.0
    %92 = vmatpush2.msra.mxu0 0.0
    %93 = vmatprep.subr.mxu0 0.0
    %94 = vmatpush2.msra.mxu0 0.0
    %95 = vmatprep.subr.mxu0 0.0
    %96 = vmatpush2.msra.mxu0 0.0
    %97 = vmatprep.subr.mxu0 0.0
    %98 = vmatpush2.msra.mxu0 0.0
    %99 = vmatprep.subr.mxu0 0.0
    %100 = vmatpush2.msra.mxu0 0.0
    %101 = vmatprep.subr.mxu0 0.0
    %102 = vmatpush2.msra.mxu0 0.0
    %103 = vmatprep.subr.mxu0 0.0
    %104 = vmatpush2.msra.mxu0 0.0
    %105 = vmatprep.subr.mxu0 0.0
    %106 = vmatpush2.msra.mxu0 0.0
    %107 = vmatprep.subr.mxu0 0.0
    %108 = vmatpush2.msra.mxu0 0.0
    %109 = vmatprep.subr.mxu0 0.0
    %110 = vmatpush2.msra.mxu0 0.0
    %111 = vmatprep.subr.mxu0 0.0
    %112 = vmatpush2.msra.mxu0 0.0
    %113 = vmatprep.subr.mxu0 0.0
    %114 = vmatpush2.msra.mxu0 0.0
    %115 = vmatprep.subr.mxu0 0.0
    %116 = vmatpush2.msra.mxu0 0.0
    %117 = vmatprep.subr.mxu0 0.0
    %118 = vmatpush2.msra.mxu0 0.0
    %119 = vmatprep.mubr.f32.mxu0 0.0
    %120 = vmatmul.mubr.f32.gmra.mxu0 %v38
    %v121 = vpop.f32.mrf.mxu0
    %v122 = vadd.f32 0.0, %v121
    %v123 = vpop.f32.mrf.mxu0
    %124 = vdwg.mxu0
    %125 = vst [vmem:[#allocation7] sm:$0xff] %v122
    // Predicated region
    $region18: #{tpu_custom_call.1} parent=1 // pred_check
      _
    $region19: #{tpu_custom_call.1} parent=1 // pred_check_branch
      %127 = sbr.rel (0) target = $region21
    $region20: #{tpu_custom_call.1} parent=1 // pred_region
      %s129 = ssub.s32 128, 128
      %130 = vsyncadd [#allocation4], %s129
      %s132 = sshll.u32 [#allocation7], 4
      %s133 = int_to_ptr.vmem [resolvable:$true] %s132
      %135 = dma.vmem_to_hbm [thread:$0]  %s133, 128, %s2, [#allocation4]
    $region21: #{tpu_custom_call.1} parent=1 // pred_fallthru
      _
    // Predicated region
    $region22: #{tpu_custom_call.1} parent=1 // pred_check
      _
    $region23: #{tpu_custom_call.1} parent=1 // pred_check_branch
      %137 = sbr.rel (0) target = $region25
    $region24: #{tpu_custom_call.1} parent=1 // pred_region
      %138 = dma.done [#allocation4], 128
    $region25: #{tpu_custom_call.1} parent=1 // pred_fallthru
      _
    %139 = vsyncpa [#allocation3], 1
    %140 = vsyncpa [#allocation6], 1
    %141 = vsyncpa [#allocation4], 1

</llo_original>
